<compile_context>
chip_gen: v7x
topology: tpu7x:2x2x1
jax: 0.10.0
libtpu: 0.0.40
codegen_flags: <defaults>
</compile_context>

<pallas_src>
import jax
import jax.numpy as jnp
from jax.experimental import pallas as pl
from jax.experimental.pallas import tpu as pltpu


def mlp_kernel(x_ref,
               w1_ref, b1_ref,
               w2_ref, b2_ref,
               w3_ref, b3_ref,
               w4_ref, b4_ref,
               o_ref):
    # Cast the f32 input tile to bf16 in-kernel (cheap VPU cast on a 32-wide tile).
    x = x_ref[...].astype(jnp.bfloat16)
    # Layer 1: Linear(n_feature -> 256) + ReLU  (bf16 matmul, f32 accumulate)
    h = jnp.dot(x, w1_ref[...], preferred_element_type=jnp.float32)
    h = jnp.maximum(h + b1_ref[...], 0.0)
    # Layer 2: Linear(256 -> 128) + ReLU
    h = jnp.dot(h.astype(jnp.bfloat16), w2_ref[...],
                preferred_element_type=jnp.float32)
    h = jnp.maximum(h + b2_ref[...], 0.0)
    # Layer 3: Linear(128 -> 64) + ReLU
    h = jnp.dot(h.astype(jnp.bfloat16), w3_ref[...],
                preferred_element_type=jnp.float32)
    h = jnp.maximum(h + b3_ref[...], 0.0)
    # Layer 4: Linear(64 -> n_out), no activation; store in output dtype (bf16).
    h = jnp.dot(h.astype(jnp.bfloat16), w4_ref[...],
                preferred_element_type=jnp.float32)
    o_ref[...] = (h + b4_ref[...]).astype(o_ref.dtype)


def _round_up(v, m):
    return ((v + m - 1) // m) * m


def _pick_tile_m(batch):
    """Few, big batch tiles. 2-way split for v7x's two TCs when B is big enough."""
    if batch >= 256:
        tile = _round_up(pl.cdiv(batch, 2), 8)   # grid_m == 2 (both v7x cores busy)
    else:
        tile = _round_up(batch, 8)               # single grid step (v5e/v6e friendly)
    return min(tile, 2048)                       # still only a few MB of VMEM


def mlp_forward(x, params, *, tile_m=None, out_dtype=jnp.bfloat16):
    """x: [B, n_feature] float32. params: dict of w1..w4 ([in,out]) and b1..b4.

    Returns [B, n_out] in `out_dtype` (bf16 by default to halve HBM writeback).
    """
    w1, b1 = params["w1"], params["b1"]
    w2, b2 = params["w2"], params["b2"]
    w3, b3 = params["w3"], params["b3"]
    w4, b4 = params["w4"], params["b4"]

    B, F = x.shape
    n_out = w4.shape[1]

    if tile_m is None:
        tile_m = _pick_tile_m(B)
    grid_m = pl.cdiv(B, tile_m)   # last block may be partial; OOB stores are masked

    bf16 = jnp.bfloat16
    # Weights stay resident in VMEM in bf16 (one-time tiny cast, ~0.1 MB total).
    w1b, w2b, w3b, w4b = (w.astype(bf16) for w in (w1, w2, w3, w4))
    # Biases stay f32 as (1, dim) rows that broadcast over the batch tile.
    b1r = b1.reshape(1, -1).astype(jnp.float32)
    b2r = b2.reshape(1, -1).astype(jnp.float32)
    b3r = b3.reshape(1, -1).astype(jnp.float32)
    b4r = b4.reshape(1, -1).astype(jnp.float32)

    def resident(arr):
        # Constant block index -> fetched once, stays resident across grid steps.
        shape = arr.shape
        return pl.BlockSpec(shape, lambda i: (0,) * len(shape))

    out = pl.pallas_call(
        mlp_kernel,
        out_shape=jax.ShapeDtypeStruct((B, n_out), out_dtype),
        grid_spec=pltpu.PrefetchScalarGridSpec(
            num_scalar_prefetch=0,
            grid=(grid_m,),
            in_specs=[
                pl.BlockSpec((tile_m, F), lambda i: (i, 0)),   # x batch tile (f32)
                resident(w1b), resident(b1r),
                resident(w2b), resident(b2r),
                resident(w3b), resident(b3r),
                resident(w4b), resident(b4r),
            ],
            # Block last dim == full array last dim (n_out), so no 16x zero padding;
            # writeback is exactly B * n_out * 2 bytes.
            out_specs=pl.BlockSpec((tile_m, n_out), lambda i: (i, 0)),
        ),
        compiler_params=pltpu.CompilerParams(
            dimension_semantics=("parallel",),   # batch tiles shard across TCs (v7x)
        ),
    )(x, w1b, b1r, w2b, b2r, w3b, b3r, w4b, b4r)

    return out


def init_params(key, n_feature, n_out):
    """Deterministic synthetic init matching the PyTorch layer shapes."""
    dims = [(n_feature, 256), (256, 128), (128, 64), (64, n_out)]
    params = {}
    keys = jax.random.split(key, len(dims))
    for idx, ((din, dout), k) in enumerate(zip(dims, keys), start=1):
        kw, kb = jax.random.split(k)
        bound = 1.0 / jnp.sqrt(jnp.float32(din))  # torch Linear default U(-1/sqrt(in), 1/sqrt(in))
        params[f"w{idx}"] = jax.random.uniform(kw, (din, dout), jnp.float32, -bound, bound)
        params[f"b{idx}"] = jax.random.uniform(kb, (dout,), jnp.float32, -bound, bound)
    return params


def mlp_reference_f32(x, params):
    h = jnp.maximum(x @ params["w1"] + params["b1"], 0.0)
    h = jnp.maximum(h @ params["w2"] + params["b2"], 0.0)
    h = jnp.maximum(h @ params["w3"] + params["b3"], 0.0)
    return h @ params["w4"] + params["b4"]


def mlp_reference_bf16(x, params):
    """Same mixed-precision recipe as the kernel (bf16 matmuls, f32 accumulate)."""
    bf = jnp.bfloat16

    def dot(a, w):
        return jnp.dot(a.astype(bf), w.astype(bf), preferred_element_type=jnp.float32)

    h = jnp.maximum(dot(x, params["w1"]) + params["b1"], 0.0)
    h = jnp.maximum(dot(h, params["w2"]) + params["b2"], 0.0)
    h = jnp.maximum(dot(h, params["w3"]) + params["b3"], 0.0)
    return dot(h, params["w4"]) + params["b4"]


if __name__ == "__main__":
    n_feature = 32
    n_out = 8
    batch = 256   # auto tile_m -> 128, grid of 2 (both v7x TensorCores get a tile)

    key = jax.random.PRNGKey(0)
    kx, kp = jax.random.split(key)
    x = jax.random.normal(kx, (batch, n_feature), jnp.float32)
    params = init_params(kp, n_feature, n_out)

    out = mlp_forward(x, params)
    out = jax.block_until_ready(out)
    assert out.shape == (batch, n_out)
    assert out.dtype == jnp.bfloat16
    out_f32 = out.astype(jnp.float32)

    # Tight check vs. a reference using the identical bf16/f32 mixed-precision
    # recipe (extra slack for the bf16 rounding of the final store).
    ref_bf16 = mlp_reference_bf16(x, params)
    assert jnp.allclose(out_f32, ref_bf16, atol=2e-2, rtol=2e-2), \
        "mismatch vs. bf16-matched reference"

    # Loose check vs. the full-f32 PyTorch-equivalent reference (bf16 rounding error).
    ref_f32 = mlp_reference_f32(x, params)
    assert jnp.allclose(out_f32, ref_f32, atol=5e-2, rtol=5e-2), \
        "mismatch vs. f32 reference"

    print("KERNEL_OK")
</pallas_src>

<mosaic_0001>
module attributes {stable_mosaic.version = 11 : i64} {
  func.func @mlp_kernel(%arg0: i32, %arg1: memref<128x32xf32, #tpu.memory_space<vmem>>, %arg2: memref<32x256xbf16, #tpu.memory_space<vmem>>, %arg3: memref<1x256xf32, #tpu.memory_space<vmem>>, %arg4: memref<256x128xbf16, #tpu.memory_space<vmem>>, %arg5: memref<1x128xf32, #tpu.memory_space<vmem>>, %arg6: memref<128x64xbf16, #tpu.memory_space<vmem>>, %arg7: memref<1x64xf32, #tpu.memory_space<vmem>>, %arg8: memref<64x8xbf16, #tpu.memory_space<vmem>>, %arg9: memref<1x8xf32, #tpu.memory_space<vmem>>, %arg10: memref<128x8xbf16, #tpu.memory_space<vmem>>) attributes {dimension_semantics = [#tpu.dimension_semantics<parallel>], iteration_bounds = array<i64: 2>, scalar_prefetch = 0 : i64, scratch_operands = 0 : i64, tpu.core_type = #tpu.core_type<tc>, window_params = [{transform_indices = @transform_0, window_bounds = array<i64: 128, 32>}, {pipeline_mode = #tpu.pipeline_mode<synchronous>, transform_indices = @transform_1, window_bounds = array<i64: 32, 256>}, {pipeline_mode = #tpu.pipeline_mode<synchronous>, transform_indices = @transform_2, window_bounds = array<i64: 1, 256>}, {pipeline_mode = #tpu.pipeline_mode<synchronous>, transform_indices = @transform_3, window_bounds = array<i64: 256, 128>}, {pipeline_mode = #tpu.pipeline_mode<synchronous>, transform_indices = @transform_4, window_bounds = array<i64: 1, 128>}, {pipeline_mode = #tpu.pipeline_mode<synchronous>, transform_indices = @transform_5, window_bounds = array<i64: 128, 64>}, {pipeline_mode = #tpu.pipeline_mode<synchronous>, transform_indices = @transform_6, window_bounds = array<i64: 1, 64>}, {pipeline_mode = #tpu.pipeline_mode<synchronous>, transform_indices = @transform_7, window_bounds = array<i64: 64, 8>}, {pipeline_mode = #tpu.pipeline_mode<synchronous>, transform_indices = @transform_8, window_bounds = array<i64: 1, 8>}, {transform_indices = @transform_9, window_bounds = array<i64: 128, 8>}]} {
    %c0 = arith.constant 0 : index
    %c0_0 = arith.constant 0 : index
    %0 = vector.load %arg1[%c0, %c0_0] : memref<128x32xf32, #tpu.memory_space<vmem>>, vector<128x32xf32>
    %1 = arith.truncf %0 : vector<128x32xf32> to vector<128x32xbf16>
    %c0_1 = arith.constant 0 : index
    %c0_2 = arith.constant 0 : index
    %2 = vector.load %arg2[%c0_1, %c0_2] : memref<32x256xbf16, #tpu.memory_space<vmem>>, vector<32x256xbf16>
    %cst = arith.constant dense<0.000000e+00> : vector<128x256xf32>
    %3 = tpu.matmul %1, %2, %cst {dimension_numbers = #tpu.dot_dimension_numbers<[1], [0], [0], [1], [0, 0, 1, 1], [], []>} : vector<128x32xbf16>, vector<32x256xbf16>, vector<128x256xf32> -> vector<128x256xf32>
    %c0_3 = arith.constant 0 : index
    %c0_4 = arith.constant 0 : index
    %4 = vector.load %arg3[%c0_3, %c0_4] : memref<1x256xf32, #tpu.memory_space<vmem>>, vector<1x256xf32>
    %5 = vector.broadcast %4 : vector<1x256xf32> to vector<128x256xf32>
    %6 = arith.addf %3, %5 : vector<128x256xf32>
    %cst_5 = arith.constant 0.000000e+00 : f32
    %7 = vector.broadcast %cst_5 : f32 to vector<128x256xf32>
    %8 = arith.maximumf %6, %7 : vector<128x256xf32>
    %9 = arith.truncf %8 : vector<128x256xf32> to vector<128x256xbf16>
    %c0_6 = arith.constant 0 : index
    %c0_7 = arith.constant 0 : index
    %10 = vector.load %arg4[%c0_6, %c0_7] : memref<256x128xbf16, #tpu.memory_space<vmem>>, vector<256x128xbf16>
    %cst_8 = arith.constant dense<0.000000e+00> : vector<128x128xf32>
    %11 = tpu.matmul %9, %10, %cst_8 {dimension_numbers = #tpu.dot_dimension_numbers<[1], [0], [0], [1], [0, 0, 1, 1], [], []>} : vector<128x256xbf16>, vector<256x128xbf16>, vector<128x128xf32> -> vector<128x128xf32>
    %c0_9 = arith.constant 0 : index
    %c0_10 = arith.constant 0 : index
    %12 = vector.load %arg5[%c0_9, %c0_10] : memref<1x128xf32, #tpu.memory_space<vmem>>, vector<1x128xf32>
    %13 = vector.broadcast %12 : vector<1x128xf32> to vector<128x128xf32>
    %14 = arith.addf %11, %13 : vector<128x128xf32>
    %cst_11 = arith.constant 0.000000e+00 : f32
    %15 = vector.broadcast %cst_11 : f32 to vector<128x128xf32>
    %16 = arith.maximumf %14, %15 : vector<128x128xf32>
    %17 = arith.truncf %16 : vector<128x128xf32> to vector<128x128xbf16>
    %c0_12 = arith.constant 0 : index
    %c0_13 = arith.constant 0 : index
    %18 = vector.load %arg6[%c0_12, %c0_13] : memref<128x64xbf16, #tpu.memory_space<vmem>>, vector<128x64xbf16>
    %cst_14 = arith.constant dense<0.000000e+00> : vector<128x64xf32>
    %19 = tpu.matmul %17, %18, %cst_14 {dimension_numbers = #tpu.dot_dimension_numbers<[1], [0], [0], [1], [0, 0, 1, 1], [], []>} : vector<128x128xbf16>, vector<128x64xbf16>, vector<128x64xf32> -> vector<128x64xf32>
    %c0_15 = arith.constant 0 : index
    %c0_16 = arith.constant 0 : index
    %20 = vector.load %arg7[%c0_15, %c0_16] : memref<1x64xf32, #tpu.memory_space<vmem>>, vector<1x64xf32>
    %21 = vector.broadcast %20 : vector<1x64xf32> to vector<128x64xf32>
    %22 = arith.addf %19, %21 : vector<128x64xf32>
    %cst_17 = arith.constant 0.000000e+00 : f32
    %23 = vector.broadcast %cst_17 : f32 to vector<128x64xf32>
    %24 = arith.maximumf %22, %23 : vector<128x64xf32>
    %25 = arith.truncf %24 : vector<128x64xf32> to vector<128x64xbf16>
    %c0_18 = arith.constant 0 : index
    %c0_19 = arith.constant 0 : index
    %26 = vector.load %arg8[%c0_18, %c0_19] : memref<64x8xbf16, #tpu.memory_space<vmem>>, vector<64x8xbf16>
    %cst_20 = arith.constant dense<0.000000e+00> : vector<128x8xf32>
    %27 = tpu.matmul %25, %26, %cst_20 {dimension_numbers = #tpu.dot_dimension_numbers<[1], [0], [0], [1], [0, 0, 1, 1], [], []>} : vector<128x64xbf16>, vector<64x8xbf16>, vector<128x8xf32> -> vector<128x8xf32>
    %c0_21 = arith.constant 0 : index
    %c0_22 = arith.constant 0 : index
    %28 = vector.load %arg9[%c0_21, %c0_22] : memref<1x8xf32, #tpu.memory_space<vmem>>, vector<1x8xf32>
    %29 = vector.broadcast %28 : vector<1x8xf32> to vector<128x8xf32>
    %30 = arith.addf %27, %29 : vector<128x8xf32>
    %31 = arith.truncf %30 : vector<128x8xf32> to vector<128x8xbf16>
    %c0_23 = arith.constant 0 : index
    %c0_24 = arith.constant 0 : index
    %32 = vector.load %arg10[%c0_23, %c0_24] : memref<128x8xbf16, #tpu.memory_space<vmem>>, vector<128x8xbf16>
    tpu.vector_store %arg10[%c0_23, %c0_24], %31 {strides = array<i32>} : memref<128x8xbf16, #tpu.memory_space<vmem>>, vector<128x8xbf16>,
    return
  }
  func.func @transform_0(%arg0: i32) -> (i32, i32) {
    %c0_i32 = arith.constant 0 : i32
    %c0_i32_0 = arith.constant 0 : i32
    return %arg0, %c0_i32 : i32, i32
  }
  func.func @transform_1(%arg0: i32) -> (i32, i32) {
    %c0_i32 = arith.constant 0 : i32
    %c0_i32_0 = arith.constant 0 : i32
    %c0_i32_1 = arith.constant 0 : i32
    return %c0_i32, %c0_i32_0 : i32, i32
  }
  func.func @transform_2(%arg0: i32) -> (i32, i32) {
    %c0_i32 = arith.constant 0 : i32
    %c0_i32_0 = arith.constant 0 : i32
    %c0_i32_1 = arith.constant 0 : i32
    return %c0_i32, %c0_i32_0 : i32, i32
  }
  func.func @transform_3(%arg0: i32) -> (i32, i32) {
    %c0_i32 = arith.constant 0 : i32
    %c0_i32_0 = arith.constant 0 : i32
    %c0_i32_1 = arith.constant 0 : i32
    return %c0_i32, %c0_i32_0 : i32, i32
  }
  func.func @transform_4(%arg0: i32) -> (i32, i32) {
    %c0_i32 = arith.constant 0 : i32
    %c0_i32_0 = arith.constant 0 : i32
    %c0_i32_1 = arith.constant 0 : i32
    return %c0_i32, %c0_i32_0 : i32, i32
  }
  func.func @transform_5(%arg0: i32) -> (i32, i32) {
    %c0_i32 = arith.constant 0 : i32
    %c0_i32_0 = arith.constant 0 : i32
    %c0_i32_1 = arith.constant 0 : i32
    return %c0_i32, %c0_i32_0 : i32, i32
  }
  func.func @transform_6(%arg0: i32) -> (i32, i32) {
    %c0_i32 = arith.constant 0 : i32
    %c0_i32_0 = arith.constant 0 : i32
    %c0_i32_1 = arith.constant 0 : i32
    return %c0_i32, %c0_i32_0 : i32, i32
  }
  func.func @transform_7(%arg0: i32) -> (i32, i32) {
    %c0_i32 = arith.constant 0 : i32
    %c0_i32_0 = arith.constant 0 : i32
    %c0_i32_1 = arith.constant 0 : i32
    return %c0_i32, %c0_i32_0 : i32, i32
  }
  func.func @transform_8(%arg0: i32) -> (i32, i32) {
    %c0_i32 = arith.constant 0 : i32
    %c0_i32_0 = arith.constant 0 : i32
    %c0_i32_1 = arith.constant 0 : i32
    return %c0_i32, %c0_i32_0 : i32, i32
  }
  func.func @transform_9(%arg0: i32) -> (i32, i32) {
    %c0_i32 = arith.constant 0 : i32
    %c0_i32_0 = arith.constant 0 : i32
    return %arg0, %c0_i32 : i32, i32
  }
}

</mosaic_0001>

<llo_original>
// kernel: tpu_custom_call.1
$region0: #{tpu_custom_call.1}
  #allocation0 [shape = 'u32[]', space=smem, size = 0x4, offset = 0x4, fixed_abs, tag = 'smem constant byte address 0x4 - core index']
  #allocation1 [shape = 'u32[144,128]{1,0:T(1,128)}', space=vmem, size = 0x12000, scoped, tag = 'internal scratch']
  %s0 = inlined_call_operand.vmem [shape: f32[256,32], index: 0, kind: input, shape index: {}]
  %s1 = inlined_call_operand.vmem [shape: bf16[32,256], index: 1, kind: input, shape index: {}]
  %s2 = inlined_call_operand.vmem [shape: f32[1,256], index: 2, kind: input, shape index: {}]
  %s3 = inlined_call_operand.vmem [shape: bf16[256,128], index: 3, kind: input, shape index: {}]
  %s4 = inlined_call_operand.vmem [shape: f32[1,128], index: 4, kind: input, shape index: {}]
  %s5 = inlined_call_operand.vmem [shape: bf16[128,64], index: 5, kind: input, shape index: {}]
  %s6 = inlined_call_operand.vmem [shape: f32[1,64], index: 6, kind: input, shape index: {}]
  %s7 = inlined_call_operand.vmem [shape: bf16[64,8], index: 7, kind: input, shape index: {}]
  %s8 = inlined_call_operand.vmem [shape: f32[1,8], index: 8, kind: input, shape index: {}]
  %s9 = inlined_call_operand.vmem [shape: bf16[256,8], index: 9, kind: output, shape index: {}]
  %s10 = sld [smem:[#allocation0]]
  $region69: #{tpu_custom_call.1} parent=0
    _
  %s12 = ssub.s32 1, %s10
  %s13 = scalar_select 0, %s12, %s10
  loop: start=0, step=1, limit=4
  $region2: #{tpu_custom_call.1} parent=0 // loop_pre_header
    _
  $region3: #{tpu_custom_call.1} parent=0 // loop_header
    %s15 = sphi 0, %s19
    %p16 = scmp.ge.s32.totalorder %s15, 4
    %s25 = sphi 0, %s27
    %s28 = sphi 0, %s25
    %s29 = sphi 0, %s28
    %s45 = sphi 0, %s29
    %s49 = sphi 0, %s49
    %s51 = sphi 0, %s49
    %s52 = sphi 0, %s51
    %s66 = sphi 0, %s52
    %s70 = sphi 0, %s70
    %s72 = sphi 0, %s70
    %s73 = sphi 0, %s72
    %s87 = sphi 0, %s73
    %s91 = sphi 0, %s91
    %s93 = sphi 0, %s91
    %s94 = sphi 0, %s93
    %s108 = sphi 0, %s94
    %s112 = sphi 0, %s112
    %s114 = sphi 0, %s112
    %s115 = sphi 0, %s114
    %s129 = sphi 0, %s115
    %s133 = sphi 0, %s133
    %s135 = sphi 0, %s133
    %s136 = sphi 0, %s135
    %s150 = sphi 0, %s136
    %s154 = sphi 0, %s154
    %s156 = sphi 0, %s154
    %s157 = sphi 0, %s156
    %s171 = sphi 0, %s157
    %s175 = sphi 0, %s175
    %s177 = sphi 0, %s175
    %s178 = sphi 0, %s177
    %s192 = sphi 0, %s178
    %s196 = sphi 0, %s196
    %s198 = sphi 0, %s196
    %s199 = sphi 0, %s198
    %s213 = sphi 0, %s199
    %s219 = sphi 0, %s221
    %s222 = sphi 0, %s219
    %s223 = sphi 0, %s222
    %s239 = sphi 0, %s223
  $region4: #{tpu_custom_call.1} parent=0 // loop_header_branch
    %18 = sbr.rel (%p16) target = $region8
  $region5: #{tpu_custom_call.1} parent=0 // loop_body
    %s20 = ssub.s32 %s15, 1
    %s21 = ssub.s32 %s15, 2
    %s22 = sadd.s32 %s15, 1
    %s23 = ssub.s32 %s15, %s22
    %p24 = scmp.eq.s32.totalorder %s23, 0
    %s26 = sadd.s32 %s25, 1
    %s27 = scalar_select %p24, %s25, %s26
    %p30 = pneg %p24
    %p31 = scmp.eq.s32.totalorder %s15, 1
    %p32 = por %p30, %p31
    %p33 = scmp.ne.s32.totalorder %s25, %s28
    %p34 = scmp.eq.s32.totalorder %s15, 0
    %p35 = por %p33, %p34
    %p36 = scmp.ne.s32.totalorder %s25, %s28
    %p37 = scmp.eq.s32.totalorder %s20, 1
    %p38 = por %p36, %p37
    %p39 = scmp.ne.s32.totalorder %s28, %s29
    %p40 = scmp.eq.s32.totalorder %s20, 0
    %p41 = por %p39, %p40
    %p42 = scmp.ne.s32.totalorder %s28, %s29
    %p43 = scmp.eq.s32.totalorder %s21, 1
    %p44 = por %p42, %p43
    %p46 = scmp.ne.s32.totalorder %s29, %s45
    %p47 = scmp.eq.s32.totalorder %s21, 0
    %p48 = por %p46, %p47
    %s50 = sadd.s32 %s49, 1
    %p53 = scmp.eq.s32.totalorder %s15, 1
    %p54 = scmp.ne.s32.totalorder %s49, %s51
    %p55 = scmp.eq.s32.totalorder %s15, 0
    %p56 = por %p54, %p55
    %p57 = scmp.ne.s32.totalorder %s49, %s51
    %p58 = scmp.eq.s32.totalorder %s20, 1
    %p59 = por %p57, %p58
    %p60 = scmp.ne.s32.totalorder %s51, %s52
    %p61 = scmp.eq.s32.totalorder %s20, 0
    %p62 = por %p60, %p61
    %p63 = scmp.ne.s32.totalorder %s51, %s52
    %p64 = scmp.eq.s32.totalorder %s21, 1
    %p65 = por %p63, %p64
    %p67 = scmp.ne.s32.totalorder %s52, %s66
    %p68 = scmp.eq.s32.totalorder %s21, 0
    %p69 = por %p67, %p68
    %s71 = sadd.s32 %s70, 1
    %p74 = scmp.eq.s32.totalorder %s15, 1
    %p75 = scmp.ne.s32.totalorder %s70, %s72
    %p76 = scmp.eq.s32.totalorder %s15, 0
    %p77 = por %p75, %p76
    %p78 = scmp.ne.s32.totalorder %s70, %s72
    %p79 = scmp.eq.s32.totalorder %s20, 1
    %p80 = por %p78, %p79
    %p81 = scmp.ne.s32.totalorder %s72, %s73
    %p82 = scmp.eq.s32.totalorder %s20, 0
    %p83 = por %p81, %p82
    %p84 = scmp.ne.s32.totalorder %s72, %s73
    %p85 = scmp.eq.s32.totalorder %s21, 1
    %p86 = por %p84, %p85
    %p88 = scmp.ne.s32.totalorder %s73, %s87
    %p89 = scmp.eq.s32.totalorder %s21, 0
    %p90 = por %p88, %p89
    %s92 = sadd.s32 %s91, 1
    %p95 = scmp.eq.s32.totalorder %s15, 1
    %p96 = scmp.ne.s32.totalorder %s91, %s93
    %p97 = scmp.eq.s32.totalorder %s15, 0
    %p98 = por %p96, %p97
    %p99 = scmp.ne.s32.totalorder %s91, %s93
    %p100 = scmp.eq.s32.totalorder %s20, 1
    %p101 = por %p99, %p100
    %p102 = scmp.ne.s32.totalorder %s93, %s94
    %p103 = scmp.eq.s32.totalorder %s20, 0
    %p104 = por %p102, %p103
    %p105 = scmp.ne.s32.totalorder %s93, %s94
    %p106 = scmp.eq.s32.totalorder %s21, 1
    %p107 = por %p105, %p106
    %p109 = scmp.ne.s32.totalorder %s94, %s108
    %p110 = scmp.eq.s32.totalorder %s21, 0
    %p111 = por %p109, %p110
    %s113 = sadd.s32 %s112, 1
    %p116 = scmp.eq.s32.totalorder %s15, 1
    %p117 = scmp.ne.s32.totalorder %s112, %s114
    %p118 = scmp.eq.s32.totalorder %s15, 0
    %p119 = por %p117, %p118
    %p120 = scmp.ne.s32.totalorder %s112, %s114
    %p121 = scmp.eq.s32.totalorder %s20, 1
    %p122 = por %p120, %p121
    %p123 = scmp.ne.s32.totalorder %s114, %s115
    %p124 = scmp.eq.s32.totalorder %s20, 0
    %p125 = por %p123, %p124
    %p126 = scmp.ne.s32.totalorder %s114, %s115
    %p127 = scmp.eq.s32.totalorder %s21, 1
    %p128 = por %p126, %p127
    %p130 = scmp.ne.s32.totalorder %s115, %s129
    %p131 = scmp.eq.s32.totalorder %s21, 0
    %p132 = por %p130, %p131
    %s134 = sadd.s32 %s133, 1
    %p137 = scmp.eq.s32.totalorder %s15, 1
    %p138 = scmp.ne.s32.totalorder %s133, %s135
    %p139 = scmp.eq.s32.totalorder %s15, 0
    %p140 = por %p138, %p139
    %p141 = scmp.ne.s32.totalorder %s133, %s135
    %p142 = scmp.eq.s32.totalorder %s20, 1
    %p143 = por %p141, %p142
    %p144 = scmp.ne.s32.totalorder %s135, %s136
    %p145 = scmp.eq.s32.totalorder %s20, 0
    %p146 = por %p144, %p145
    %p147 = scmp.ne.s32.totalorder %s135, %s136
    %p148 = scmp.eq.s32.totalorder %s21, 1
    %p149 = por %p147, %p148
    %p151 = scmp.ne.s32.totalorder %s136, %s150
    %p152 = scmp.eq.s32.totalorder %s21, 0
    %p153 = por %p151, %p152
    %s155 = sadd.s32 %s154, 1
    %p158 = scmp.eq.s32.totalorder %s15, 1
    %p159 = scmp.ne.s32.totalorder %s154, %s156
    %p160 = scmp.eq.s32.totalorder %s15, 0
    %p161 = por %p159, %p160
    %p162 = scmp.ne.s32.totalorder %s154, %s156
    %p163 = scmp.eq.s32.totalorder %s20, 1
    %p164 = por %p162, %p163
    %p165 = scmp.ne.s32.totalorder %s156, %s157
    %p166 = scmp.eq.s32.totalorder %s20, 0
    %p167 = por %p165, %p166
    %p168 = scmp.ne.s32.totalorder %s156, %s157
    %p169 = scmp.eq.s32.totalorder %s21, 1
    %p170 = por %p168, %p169
    %p172 = scmp.ne.s32.totalorder %s157, %s171
    %p173 = scmp.eq.s32.totalorder %s21, 0
    %p174 = por %p172, %p173
    %s176 = sadd.s32 %s175, 1
    %p179 = scmp.eq.s32.totalorder %s15, 1
    %p180 = scmp.ne.s32.totalorder %s175, %s177
    %p181 = scmp.eq.s32.totalorder %s15, 0
    %p182 = por %p180, %p181
    %p183 = scmp.ne.s32.totalorder %s175, %s177
    %p184 = scmp.eq.s32.totalorder %s20, 1
    %p185 = por %p183, %p184
    %p186 = scmp.ne.s32.totalorder %s177, %s178
    %p187 = scmp.eq.s32.totalorder %s20, 0
    %p188 = por %p186, %p187
    %p189 = scmp.ne.s32.totalorder %s177, %s178
    %p190 = scmp.eq.s32.totalorder %s21, 1
    %p191 = por %p189, %p190
    %p193 = scmp.ne.s32.totalorder %s178, %s192
    %p194 = scmp.eq.s32.totalorder %s21, 0
    %p195 = por %p193, %p194
    %s197 = sadd.s32 %s196, 1
    %p200 = scmp.eq.s32.totalorder %s15, 1
    %p201 = scmp.ne.s32.totalorder %s196, %s198
    %p202 = scmp.eq.s32.totalorder %s15, 0
    %p203 = por %p201, %p202
    %p204 = scmp.ne.s32.totalorder %s196, %s198
    %p205 = scmp.eq.s32.totalorder %s20, 1
    %p206 = por %p204, %p205
    %p207 = scmp.ne.s32.totalorder %s198, %s199
    %p208 = scmp.eq.s32.totalorder %s20, 0
    %p209 = por %p207, %p208
    %p210 = scmp.ne.s32.totalorder %s198, %s199
    %p211 = scmp.eq.s32.totalorder %s21, 1
    %p212 = por %p210, %p211
    %p214 = scmp.ne.s32.totalorder %s199, %s213
    %p215 = scmp.eq.s32.totalorder %s21, 0
    %p216 = por %p214, %p215
    %s217 = ssub.s32 %s15, %s22
    %p218 = scmp.eq.s32.totalorder %s217, 0
    %s220 = sadd.s32 %s219, 1
    %s221 = scalar_select %p218, %s219, %s220
    %p224 = pneg %p218
    %p225 = scmp.eq.s32.totalorder %s15, 1
    %p226 = por %p224, %p225
    %p227 = scmp.ne.s32.totalorder %s219, %s222
    %p228 = scmp.eq.s32.totalorder %s15, 0
    %p229 = por %p227, %p228
    %p230 = scmp.ne.s32.totalorder %s219, %s222
    %p231 = scmp.eq.s32.totalorder %s20, 1
    %p232 = por %p230, %p231
    %p233 = scmp.ne.s32.totalorder %s222, %s223
    %p234 = scmp.eq.s32.totalorder %s20, 0
    %p235 = por %p233, %p234
    %p236 = scmp.ne.s32.totalorder %s222, %s223
    %p237 = scmp.eq.s32.totalorder %s21, 1
    %p238 = por %p236, %p237
    %p240 = scmp.ne.s32.totalorder %s223, %s239
    %p241 = scmp.eq.s32.totalorder %s21, 0
    %p242 = por %p240, %p241
    %p243 = scmp.le.s32.totalorder 1, %s15
    %p244 = scmp.lt.s32.totalorder %s15, 3
    %p245 = pnand %p243, %p244
    %p246 = pneg %p245
    // Predicated region
    $region9: #{tpu_custom_call.1} parent=5 // pred_check
      _
    $region10: #{tpu_custom_call.1} parent=5 // pred_check_branch
      %248 = sbr.rel (%p245) target = $region12
    $region11: #{tpu_custom_call.1} parent=5 // pred_region
      %s249 = ssub.s32 %s15, 1
      // Predicated region
      $region13: #{tpu_custom_call.1} parent=11 // pred_check
        %p250 = pneg %p62
      $region14: #{tpu_custom_call.1} parent=11 // pred_check_branch
        %252 = sbr.rel (%p250) target = $region16
      $region15: #{tpu_custom_call.1} parent=11 // pred_region
        _
      $region16: #{tpu_custom_call.1} parent=11 // pred_fallthru
        _
      // Predicated region
      $region17: #{tpu_custom_call.1} parent=11 // pred_check
        %p253 = pneg %p83
      $region18: #{tpu_custom_call.1} parent=11 // pred_check_branch
        %255 = sbr.rel (%p253) target = $region20
      $region19: #{tpu_custom_call.1} parent=11 // pred_region
        _
      $region20: #{tpu_custom_call.1} parent=11 // pred_fallthru
        _
      // Predicated region
      $region21: #{tpu_custom_call.1} parent=11 // pred_check
        %p256 = pneg %p104
      $region22: #{tpu_custom_call.1} parent=11 // pred_check_branch
        %258 = sbr.rel (%p256) target = $region24
      $region23: #{tpu_custom_call.1} parent=11 // pred_region
        _
      $region24: #{tpu_custom_call.1} parent=11 // pred_fallthru
        _
      // Predicated region
      $region25: #{tpu_custom_call.1} parent=11 // pred_check
        %p259 = pneg %p125
      $region26: #{tpu_custom_call.1} parent=11 // pred_check_branch
        %261 = sbr.rel (%p259) target = $region28
      $region27: #{tpu_custom_call.1} parent=11 // pred_region
        _
      $region28: #{tpu_custom_call.1} parent=11 // pred_fallthru
        _
      // Predicated region
      $region29: #{tpu_custom_call.1} parent=11 // pred_check
        %p262 = pneg %p146
      $region30: #{tpu_custom_call.1} parent=11 // pred_check_branch
        %264 = sbr.rel (%p262) target = $region32
      $region31: #{tpu_custom_call.1} parent=11 // pred_region
        _
      $region32: #{tpu_custom_call.1} parent=11 // pred_fallthru
        _
      // Predicated region
      $region33: #{tpu_custom_call.1} parent=11 // pred_check
        %p265 = pneg %p167
      $region34: #{tpu_custom_call.1} parent=11 // pred_check_branch
        %267 = sbr.rel (%p265) target = $region36
      $region35: #{tpu_custom_call.1} parent=11 // pred_region
        _
      $region36: #{tpu_custom_call.1} parent=11 // pred_fallthru
        _
      // Predicated region
      $region37: #{tpu_custom_call.1} parent=11 // pred_check
        %p268 = pneg %p188
      $region38: #{tpu_custom_call.1} parent=11 // pred_check_branch
        %270 = sbr.rel (%p268) target = $region40
      $region39: #{tpu_custom_call.1} parent=11 // pred_region
        _
      $region40: #{tpu_custom_call.1} parent=11 // pred_fallthru
        _
      // Predicated region
      $region41: #{tpu_custom_call.1} parent=11 // pred_check
        %p271 = pneg %p209
      $region42: #{tpu_custom_call.1} parent=11 // pred_check_branch
        %273 = sbr.rel (%p271) target = $region44
      $region43: #{tpu_custom_call.1} parent=11 // pred_region
        _
      $region44: #{tpu_custom_call.1} parent=11 // pred_fallthru
        _
    $region12: #{tpu_custom_call.1} parent=5 // pred_fallthru
      _
    %p274 = scmp.lt.s32.totalorder %s15, 2
    // Predicated region
    $region45: #{tpu_custom_call.1} parent=5 // pred_check
      %p275 = pneg %p274
    $region46: #{tpu_custom_call.1} parent=5 // pred_check_branch
      %277 = sbr.rel (%p275) target = $region48
    $region47: #{tpu_custom_call.1} parent=5 // pred_region
      // Predicated region
      $region49: #{tpu_custom_call.1} parent=47 // pred_check
        %p278 = pneg %p35
      $region50: #{tpu_custom_call.1} parent=47 // pred_check_branch
        %280 = sbr.rel (%p278) target = $region52
      $region51: #{tpu_custom_call.1} parent=47 // pred_region
        %s281 = smul.u32 16, %s15
        %p282 = scmp.lt.s32.totalorder %s281, 31
        %s283 = scalar_select %p282, %s281, 31
        %s284 = smul.addr %s283, 8
        %s285 = scalar_lea.vmem %s0, %s284
        %s286 = smul.u32 16, %s15
      $region52: #{tpu_custom_call.1} parent=47 // pred_fallthru
        _
    $region48: #{tpu_custom_call.1} parent=5 // pred_fallthru
      _
    %p287 = scmp.le.s32.totalorder 1, %s15
    %p288 = scmp.lt.s32.totalorder %s15, 3
    %p289 = pnand %p287, %p288
    %p290 = pneg %p289
    // Predicated region
    $region53: #{tpu_custom_call.1} parent=5 // pred_check
      _
    $region54: #{tpu_custom_call.1} parent=5 // pred_check_branch
      %292 = sbr.rel (%p289) target = $region56
    $region55: #{tpu_custom_call.1} parent=5 // pred_region
      %s293 = ssub.s32 %s15, 1
      %s294 = smul.u32 16, %s20
      %p295 = scmp.lt.s32.totalorder %s294, 31
      %s296 = scalar_select %p295, %s294, 31
      %s297 = smul.addr %s296, 8
      %s298 = scalar_lea.vmem %s0, %s297
      %p299 = pneg %p41
      %p300 = pneg %p38
      %p301 = pneg %p62
      %p302 = pneg %p59
      %p303 = pneg %p83
      %p304 = pneg %p80
      %p305 = pneg %p104
      %p306 = pneg %p101
      %p307 = pneg %p125
      %p308 = pneg %p122
      %p309 = pneg %p146
      %p310 = pneg %p143
      %p311 = pneg %p167
      %p312 = pneg %p164
      %p313 = pneg %p188
      %p314 = pneg %p185
      %p315 = pneg %p209
      %p316 = pneg %p206
      %p317 = pneg %p235
      %p318 = pneg %p232
      %s319 = smul.u32 16, %s20
      %p320 = scmp.lt.s32.totalorder %s319, 31
      %s321 = scalar_select %p320, %s319, 31
      %s322 = smul.addr %s321, 4
      %s323 = scalar_lea.vmem %s9, %s322
      %s324 = smul.u32 16, %s20
      %p325 = scmp.lt.s32.totalorder %s324, 31
      %s326 = scalar_select %p325, %s324, 31
      %s327 = smul.addr %s326, 8
      %s328 = scalar_lea.vmem %s0, %s327
      %s329 = smul.u32 16, %s20
      %s330 = smul.u32 16, %s20
      %p331 = scmp.lt.s32.totalorder %s330, 31
      %s332 = scalar_select %p331, %s330, 31
      %s333 = smul.addr %s332, 4
      %s334 = scalar_lea.vmem %s9, %s333
      %s335 = smul.u32 16, %s20
      %v337 = vld [vmem:[%s328] sm:$0xff]
      %v338 = vld [vmem:[%s328 + $0x8] sm:$0xff]
      %v339 = vld [vmem:[%s328 + $0x10] sm:$0xff]
      %v340 = vld [vmem:[%s328 + $0x18] sm:$0xff]
      %v341 = vld [vmem:[%s328 + $0x20] sm:$0xff]
      %v342 = vld [vmem:[%s328 + $0x28] sm:$0xff]
      %v343 = vld [vmem:[%s328 + $0x30] sm:$0xff]
      %v344 = vld [vmem:[%s328 + $0x38] sm:$0xff]
      %v345 = vld [vmem:[%s328 + $0x40] sm:$0xff]
      %v346 = vld [vmem:[%s328 + $0x48] sm:$0xff]
      %v347 = vld [vmem:[%s328 + $0x50] sm:$0xff]
      %v348 = vld [vmem:[%s328 + $0x58] sm:$0xff]
      %v349 = vld [vmem:[%s328 + $0x60] sm:$0xff]
      %v350 = vld [vmem:[%s328 + $0x68] sm:$0xff]
      %v351 = vld [vmem:[%s328 + $0x70] sm:$0xff]
      %v352 = vld [vmem:[%s328 + $0x78] sm:$0xff]
      %v353 = vpack.c.bf16 %v338, %v337
      %v354 = vpack.c.bf16 %v340, %v339
      %v355 = vpack.c.bf16 %v342, %v341
      %v356 = vpack.c.bf16 %v344, %v343
      %v357 = vpack.c.bf16 %v346, %v345
      %v358 = vpack.c.bf16 %v348, %v347
      %v359 = vpack.c.bf16 %v350, %v349
      %v360 = vpack.c.bf16 %v352, %v351
      %v361 = vld [vmem:[%s1] sm:$0xff]
      %v362 = vld [vmem:[%s1 + $0x8] sm:$0xff]
      %v363 = vld [vmem:[%s1 + $0x10] sm:$0xff]
      %v364 = vld [vmem:[%s1 + $0x18] sm:$0xff]
      %v365 = vld [vmem:[%s2] sm:$0x3]
      %v367 = vlaneseq
      %v368 = vshrl.u32 %v367, 7
      %v369 = vsub.s32 0, %v368
      %v370 = vrot.slane %v365, %v369
      %v371 = vlaneseq
      %v372 = vshrl.u32 %v371, 7
      %v373 = vsub.s32 1, %v372
      %v374 = vrot.slane %v365, %v373
      %v381 = vunpack.c.l.b16 %v361
      %v382 = vunpack.c.h.b16 %v361
      %v383 = vunpack.c.l.b16 %v362
      %v384 = vunpack.c.h.b16 %v362
      %v385 = vunpack.c.l.b16 %v363
      %v386 = vunpack.c.h.b16 %v363
      %v387 = vunpack.c.l.b16 %v364
      %v388 = vunpack.c.h.b16 %v364
      %v389 = vpack.c.b16 %v383, %v381
      %v390 = vpack.c.b16 %v384, %v382
      %v391 = vpack.c.b16 %v387, %v385
      %v392 = vpack.c.b16 %v388, %v386
      %vm397 = vcmask 261120
      %v399 = vsel %vm397, %v353, 0
      %v402 = vsel %vm397, %v354, 0
      %v405 = vsel %vm397, %v355, 0
      %v408 = vsel %vm397, %v356, 0
      %v411 = vsel %vm397, %v357, 0
      %v414 = vsel %vm397, %v358, 0
      %v417 = vsel %vm397, %v359, 0
      %v420 = vsel %vm397, %v360, 0
      %422 = vmatprep.subr.bf16.mxu0 %v390
      %423 = vmatpush1.bf16.msra.mxu0 %v389
      %424 = vmatprep.subr.bf16.mxu0 %v392
      %425 = vmatpush1.bf16.msra.mxu0 %v391
      %426 = vmatprep.subr.bf16.mxu0 0
      %427 = vmatpush1.bf16.msra.mxu0 0
      %428 = vmatprep.subr.bf16.mxu0 0
      %429 = vmatpush1.bf16.msra.mxu0 0
      %430 = vmatprep.subr.bf16.mxu0 0
      %431 = vmatpush1.bf16.msra.mxu0 0
      %432 = vmatprep.subr.bf16.mxu0 0
      %433 = vmatpush1.bf16.msra.mxu0 0
      %434 = vmatprep.subr.bf16.mxu0 0
      %435 = vmatpush1.bf16.msra.mxu0 0
      %436 = vmatprep.subr.bf16.mxu0 0
      %437 = vmatpush1.bf16.msra.mxu0 0
      %438 = vmatprep.subr.bf16.mxu0 0
      %439 = vmatpush1.bf16.msra.mxu0 0
      %440 = vmatprep.subr.bf16.mxu0 0
      %441 = vmatpush1.bf16.msra.mxu0 0
      %442 = vmatprep.subr.bf16.mxu0 0
      %443 = vmatpush1.bf16.msra.mxu0 0
      %444 = vmatprep.subr.bf16.mxu0 0
      %445 = vmatpush1.bf16.msra.mxu0 0
      %446 = vmatprep.subr.bf16.mxu0 0
      %447 = vmatpush1.bf16.msra.mxu0 0
      %448 = vmatprep.subr.bf16.mxu0 0
      %449 = vmatpush1.bf16.msra.mxu0 0
      %450 = vmatprep.subr.bf16.mxu0 0
      %451 = vmatpush1.bf16.msra.mxu0 0
      %452 = vmatprep.subr.bf16.mxu0 0
      %453 = vmatpush1.bf16.msra.mxu0 0
      %454 = vmatprep.mubr.bf16.mxu0 0
      %455 = vmatmul.mubr.bf16.gmra.mrb[0].mxu0 %v399
      %v456 = vpop.f32.mrb[0].mxu0
      %v457 = vadd.f32 %v370, %v456
      %v458 = vpop.f32.mrb[0].mxu0
      %v459 = vadd.f32 %v374, %v458
      %v460 = vpop.f32.mrb[0].mxu0
      %v461 = vadd.f32 %v370, %v460
      %v462 = vpop.f32.mrb[0].mxu0
      %v463 = vadd.f32 %v374, %v462
      %464 = vmatprep.mubr.bf16.mxu0 0
      %465 = vmatmul.mubr.bf16.gmra.mrb[0].mxu0 %v402
      %v466 = vpop.f32.mrb[0].mxu0
      %v467 = vadd.f32 %v370, %v466
      %v468 = vpop.f32.mrb[0].mxu0
      %v469 = vadd.f32 %v374, %v468
      %v470 = vpop.f32.mrb[0].mxu0
      %v471 = vadd.f32 %v370, %v470
      %v472 = vpop.f32.mrb[0].mxu0
      %v473 = vadd.f32 %v374, %v472
      %474 = vmatprep.mubr.bf16.mxu0 0
      %475 = vmatmul.mubr.bf16.gmra.mrb[0].mxu0 %v405
      %v476 = vpop.f32.mrb[0].mxu0
      %v477 = vadd.f32 %v370, %v476
      %v478 = vpop.f32.mrb[0].mxu0
      %v479 = vadd.f32 %v374, %v478
      %v480 = vpop.f32.mrb[0].mxu0
      %v481 = vadd.f32 %v370, %v480
      %v482 = vpop.f32.mrb[0].mxu0
      %v483 = vadd.f32 %v374, %v482
      %484 = vmatprep.mubr.bf16.mxu0 0
      %485 = vmatmul.mubr.bf16.gmra.mrb[0].mxu0 %v408
      %v486 = vpop.f32.mrb[0].mxu0
      %v487 = vadd.f32 %v370, %v486
      %v488 = vpop.f32.mrb[0].mxu0
      %v489 = vadd.f32 %v374, %v488
      %v490 = vpop.f32.mrb[0].mxu0
      %v491 = vadd.f32 %v370, %v490
      %v492 = vpop.f32.mrb[0].mxu0
      %v493 = vadd.f32 %v374, %v492
      %494 = vmatprep.mubr.bf16.mxu0 0
      %495 = vmatmul.mubr.bf16.gmra.mrb[0].mxu0 %v411
      %v496 = vpop.f32.mrb[0].mxu0
      %v497 = vadd.f32 %v370, %v496
      %v498 = vpop.f32.mrb[0].mxu0
      %v499 = vadd.f32 %v374, %v498
      %v500 = vpop.f32.mrb[0].mxu0
      %v501 = vadd.f32 %v370, %v500
      %v502 = vpop.f32.mrb[0].mxu0
      %v503 = vadd.f32 %v374, %v502
      %504 = vmatprep.mubr.bf16.mxu0 0
      %505 = vmatmul.mubr.bf16.gmra.mrb[0].mxu0 %v414
      %v506 = vpop.f32.mrb[0].mxu0
      %v507 = vadd.f32 %v370, %v506
      %v508 = vpop.f32.mrb[0].mxu0
      %v509 = vadd.f32 %v374, %v508
      %v510 = vpop.f32.mrb[0].mxu0
      %v511 = vadd.f32 %v370, %v510
      %v512 = vpop.f32.mrb[0].mxu0
      %v513 = vadd.f32 %v374, %v512
      %514 = vmatprep.mubr.bf16.mxu0 0
      %515 = vmatmul.mubr.bf16.gmra.mrb[0].mxu0 %v417
      %v516 = vpop.f32.mrb[0].mxu0
      %v517 = vadd.f32 %v370, %v516
      %v518 = vpop.f32.mrb[0].mxu0
      %v519 = vadd.f32 %v374, %v518
      %v520 = vpop.f32.mrb[0].mxu0
      %v521 = vadd.f32 %v370, %v520
      %v522 = vpop.f32.mrb[0].mxu0
      %v523 = vadd.f32 %v374, %v522
      %524 = vmatprep.mubr.bf16.mxu0 0
      %525 = vmatmul.mubr.bf16.gmra.mrb[0].mxu0 %v420
      %v526 = vpop.f32.mrb[0].mxu0
      %v527 = vadd.f32 %v370, %v526
      %v528 = vpop.f32.mrb[0].mxu0
      %v529 = vadd.f32 %v374, %v528
      %v530 = vpop.f32.mrb[0].mxu0
      %v531 = vadd.f32 %v370, %v530
      %v532 = vpop.f32.mrb[0].mxu0
      %v533 = vadd.f32 %v374, %v532
      %534 = vdwg.mxu0
      %v535 = vmax.f32 %v457, 0.0
      %v536 = vmax.f32 %v459, 0.0
      %v537 = vmax.f32 %v461, 0.0
      %v538 = vmax.f32 %v463, 0.0
      %v539 = vmax.f32 %v467, 0.0
      %v540 = vmax.f32 %v469, 0.0
      %v541 = vmax.f32 %v471, 0.0
      %v542 = vmax.f32 %v473, 0.0
      %v543 = vmax.f32 %v477, 0.0
      %v544 = vmax.f32 %v479, 0.0
      %v545 = vmax.f32 %v481, 0.0
      %v546 = vmax.f32 %v483, 0.0
      %v547 = vmax.f32 %v487, 0.0
      %v548 = vmax.f32 %v489, 0.0
      %v549 = vmax.f32 %v491, 0.0
      %v550 = vmax.f32 %v493, 0.0
      %v551 = vmax.f32 %v497, 0.0
      %v552 = vmax.f32 %v499, 0.0
      %v553 = vmax.f32 %v501, 0.0
      %v554 = vmax.f32 %v503, 0.0
      %v555 = vmax.f32 %v507, 0.0
      %v556 = vmax.f32 %v509, 0.0
      %v557 = vmax.f32 %v511, 0.0
      %v558 = vmax.f32 %v513, 0.0
      %v559 = vmax.f32 %v517, 0.0
      %v560 = vmax.f32 %v519, 0.0
      %v561 = vmax.f32 %v521, 0.0
      %v562 = vmax.f32 %v523, 0.0
      %v563 = vmax.f32 %v527, 0.0
      %v564 = vmax.f32 %v529, 0.0
      %v565 = vmax.f32 %v531, 0.0
      %v566 = vmax.f32 %v533, 0.0
      %v567 = vpack.c.bf16 %v537, %v535
      %v568 = vpack.c.bf16 %v538, %v536
      %v569 = vpack.c.bf16 %v541, %v539
      %v570 = vpack.c.bf16 %v542, %v540
      %v571 = vpack.c.bf16 %v545, %v543
      %v572 = vpack.c.bf16 %v546, %v544
      %v573 = vpack.c.bf16 %v549, %v547
      %v574 = vpack.c.bf16 %v550, %v548
      %v575 = vpack.c.bf16 %v553, %v551
      %v576 = vpack.c.bf16 %v554, %v552
      %v577 = vpack.c.bf16 %v557, %v555
      %v578 = vpack.c.bf16 %v558, %v556
      %v579 = vpack.c.bf16 %v561, %v559
      %v580 = vpack.c.bf16 %v562, %v560
      %v581 = vpack.c.bf16 %v565, %v563
      %v582 = vpack.c.bf16 %v566, %v564
      %v583 = vld [vmem:[%s3] sm:$0xf]
      %v584 = vld [vmem:[%s3 + $0x4] sm:$0xf]
      %v585 = vld [vmem:[%s3 + $0x8] sm:$0xf]
      %v586 = vld [vmem:[%s3 + $0xc] sm:$0xf]
      %v587 = vld [vmem:[%s3 + $0x10] sm:$0xf]
      %v588 = vld [vmem:[%s3 + $0x14] sm:$0xf]
      %v589 = vld [vmem:[%s3 + $0x18] sm:$0xf]
      %v590 = vld [vmem:[%s3 + $0x1c] sm:$0xf]
      %v591 = vld [vmem:[%s3 + $0x20] sm:$0xf]
      %v592 = vld [vmem:[%s3 + $0x24] sm:$0xf]
      %v593 = vld [vmem:[%s3 + $0x28] sm:$0xf]
      %v594 = vld [vmem:[%s3 + $0x2c] sm:$0xf]
      %v595 = vld [vmem:[%s3 + $0x30] sm:$0xf]
      %v596 = vld [vmem:[%s3 + $0x34] sm:$0xf]
      %v597 = vld [vmem:[%s3 + $0x38] sm:$0xf]
      %v598 = vld [vmem:[%s3 + $0x3c] sm:$0xf]
      %v599 = vld [vmem:[%s3 + $0x40] sm:$0xf]
      %v600 = vld [vmem:[%s3 + $0x44] sm:$0xf]
      %v601 = vld [vmem:[%s3 + $0x48] sm:$0xf]
      %v602 = vld [vmem:[%s3 + $0x4c] sm:$0xf]
      %v603 = vld [vmem:[%s3 + $0x50] sm:$0xf]
      %v604 = vld [vmem:[%s3 + $0x54] sm:$0xf]
      %v605 = vld [vmem:[%s3 + $0x58] sm:$0xf]
      %v606 = vld [vmem:[%s3 + $0x5c] sm:$0xf]
      %v607 = vld [vmem:[%s3 + $0x60] sm:$0xf]
      %v608 = vld [vmem:[%s3 + $0x64] sm:$0xf]
      %v609 = vld [vmem:[%s3 + $0x68] sm:$0xf]
      %v610 = vld [vmem:[%s3 + $0x6c] sm:$0xf]
      %v611 = vld [vmem:[%s3 + $0x70] sm:$0xf]
      %v612 = vld [vmem:[%s3 + $0x74] sm:$0xf]
      %v613 = vld [vmem:[%s3 + $0x78] sm:$0xf]
      %v614 = vld [vmem:[%s3 + $0x7c] sm:$0xf]
      %v615 = vld [vmem:[%s4] sm:$0x1]
      %v617 = vlaneseq
      %v618 = vshrl.u32 %v617, 7
      %v619 = vsub.s32 0, %v618
      %v620 = vrot.slane %v615, %v619
      %v654 = vunpack.c.l.b16 %v583
      %v655 = vunpack.c.l.b16 %v584
      %v656 = vunpack.c.l.b16 %v585
      %v657 = vunpack.c.l.b16 %v586
      %v658 = vunpack.c.l.b16 %v587
      %v659 = vunpack.c.l.b16 %v588
      %v660 = vunpack.c.l.b16 %v589
      %v661 = vunpack.c.l.b16 %v590
      %v662 = vunpack.c.l.b16 %v591
      %v663 = vunpack.c.l.b16 %v592
      %v664 = vunpack.c.l.b16 %v593
      %v665 = vunpack.c.l.b16 %v594
      %v666 = vunpack.c.l.b16 %v595
      %v667 = vunpack.c.l.b16 %v596
      %v668 = vunpack.c.l.b16 %v597
      %v669 = vunpack.c.l.b16 %v598
      %v670 = vunpack.c.l.b16 %v599
      %v671 = vunpack.c.l.b16 %v600
      %v672 = vunpack.c.l.b16 %v601
      %v673 = vunpack.c.l.b16 %v602
      %v674 = vunpack.c.l.b16 %v603
      %v675 = vunpack.c.l.b16 %v604
      %v676 = vunpack.c.l.b16 %v605
      %v677 = vunpack.c.l.b16 %v606
      %v678 = vunpack.c.l.b16 %v607
      %v679 = vunpack.c.l.b16 %v608
      %v680 = vunpack.c.l.b16 %v609
      %v681 = vunpack.c.l.b16 %v610
      %v682 = vunpack.c.l.b16 %v611
      %v683 = vunpack.c.l.b16 %v612
      %v684 = vunpack.c.l.b16 %v613
      %v685 = vunpack.c.l.b16 %v614
      %v686 = vpack.c.b16 %v655, %v654
      %v687 = vpack.c.b16 %v657, %v656
      %v688 = vpack.c.b16 %v659, %v658
      %v689 = vpack.c.b16 %v661, %v660
      %v690 = vpack.c.b16 %v663, %v662
      %v691 = vpack.c.b16 %v665, %v664
      %v692 = vpack.c.b16 %v667, %v666
      %v693 = vpack.c.b16 %v669, %v668
      %v694 = vpack.c.b16 %v671, %v670
      %v695 = vpack.c.b16 %v673, %v672
      %v696 = vpack.c.b16 %v675, %v674
      %v697 = vpack.c.b16 %v677, %v676
      %v698 = vpack.c.b16 %v679, %v678
      %v699 = vpack.c.b16 %v681, %v680
      %v700 = vpack.c.b16 %v683, %v682
      %v701 = vpack.c.b16 %v685, %v684
      %718 = vmatprep.subr.bf16.mxu0 0
      %719 = vmatpush1.bf16.msra.mxu0 %v686
      %720 = vmatprep.subr.bf16.mxu0 0
      %721 = vmatpush1.bf16.msra.mxu0 %v687
      %722 = vmatprep.subr.bf16.mxu0 0
      %723 = vmatpush1.bf16.msra.mxu0 %v688
      %724 = vmatprep.subr.bf16.mxu0 0
      %725 = vmatpush1.bf16.msra.mxu0 %v689
      %726 = vmatprep.subr.bf16.mxu0 0
      %727 = vmatpush1.bf16.msra.mxu0 %v690
      %728 = vmatprep.subr.bf16.mxu0 0
      %729 = vmatpush1.bf16.msra.mxu0 %v691
      %730 = vmatprep.subr.bf16.mxu0 0
      %731 = vmatpush1.bf16.msra.mxu0 %v692
      %732 = vmatprep.subr.bf16.mxu0 0
      %733 = vmatpush1.bf16.msra.mxu0 %v693
      %734 = vmatprep.subr.bf16.mxu0 0
      %735 = vmatpush1.bf16.msra.mxu0 %v694
      %736 = vmatprep.subr.bf16.mxu0 0
      %737 = vmatpush1.bf16.msra.mxu0 %v695
      %738 = vmatprep.subr.bf16.mxu0 0
      %739 = vmatpush1.bf16.msra.mxu0 %v696
      %740 = vmatprep.subr.bf16.mxu0 0
      %741 = vmatpush1.bf16.msra.mxu0 %v697
      %742 = vmatprep.subr.bf16.mxu0 0
      %743 = vmatpush1.bf16.msra.mxu0 %v698
      %744 = vmatprep.subr.bf16.mxu0 0
      %745 = vmatpush1.bf16.msra.mxu0 %v699
      %746 = vmatprep.subr.bf16.mxu0 0
      %747 = vmatpush1.bf16.msra.mxu0 %v700
      %748 = vmatprep.subr.bf16.mxu0 0
      %749 = vmatpush1.bf16.msra.mxu0 %v701
      %750 = vmatprep.mubr.bf16.mxu0 %v568
      %751 = vmatmul.mubr.bf16.gmra.mrb[0].mxu0 %v567
      %v752 = vpop.f32.mrb[0].mxu0
      %v753 = vadd.f32 %v620, %v752
      %v754 = vpop.f32.mrb[0].mxu0
      %v755 = vpop.f32.mrb[0].mxu0
      %v756 = vadd.f32 %v620, %v755
      %v757 = vpop.f32.mrb[0].mxu0
      %758 = vmatprep.mubr.bf16.mxu0 %v570
      %759 = vmatmul.mubr.bf16.gmra.mrb[0].mxu0 %v569
      %v760 = vpop.f32.mrb[0].mxu0
      %v761 = vadd.f32 %v620, %v760
      %v762 = vpop.f32.mrb[0].mxu0
      %v763 = vpop.f32.mrb[0].mxu0
      %v764 = vadd.f32 %v620, %v763
      %v765 = vpop.f32.mrb[0].mxu0
      %766 = vmatprep.mubr.bf16.mxu0 %v572
      %767 = vmatmul.mubr.bf16.gmra.mrb[0].mxu0 %v571
      %v768 = vpop.f32.mrb[0].mxu0
      %v769 = vadd.f32 %v620, %v768
      %v770 = vpop.f32.mrb[0].mxu0
      %v771 = vpop.f32.mrb[0].mxu0
      %v772 = vadd.f32 %v620, %v771
      %v773 = vpop.f32.mrb[0].mxu0
      %774 = vmatprep.mubr.bf16.mxu0 %v574
      %775 = vmatmul.mubr.bf16.gmra.mrb[0].mxu0 %v573
      %v776 = vpop.f32.mrb[0].mxu0
      %v777 = vadd.f32 %v620, %v776
      %v778 = vpop.f32.mrb[0].mxu0
      %v779 = vpop.f32.mrb[0].mxu0
      %v780 = vadd.f32 %v620, %v779
      %v781 = vpop.f32.mrb[0].mxu0
      %782 = vmatprep.mubr.bf16.mxu0 %v576
      %783 = vmatmul.mubr.bf16.gmra.mrb[0].mxu0 %v575
      %v784 = vpop.f32.mrb[0].mxu0
      %v785 = vadd.f32 %v620, %v784
      %v786 = vpop.f32.mrb[0].mxu0
      %v787 = vpop.f32.mrb[0].mxu0
      %v788 = vadd.f32 %v620, %v787
      %v789 = vpop.f32.mrb[0].mxu0
      %790 = vmatprep.mubr.bf16.mxu0 %v578
      %791 = vmatmul.mubr.bf16.gmra.mrb[0].mxu0 %v577
      %v792 = vpop.f32.mrb[0].mxu0
      %v793 = vadd.f32 %v620, %v792
      %v794 = vpop.f32.mrb[0].mxu0
      %v795 = vpop.f32.mrb[0].mxu0
      %v796 = vadd.f32 %v620, %v795
      %v797 = vpop.f32.mrb[0].mxu0
      %798 = vmatprep.mubr.bf16.mxu0 %v580
      %799 = vmatmul.mubr.bf16.gmra.mrb[0].mxu0 %v579
      %v800 = vpop.f32.mrb[0].mxu0
      %v801 = vadd.f32 %v620, %v800
      %v802 = vpop.f32.mrb[0].mxu0
      %v803 = vpop.f32.mrb[0].mxu0
      %v804 = vadd.f32 %v620, %v803
      %v805 = vpop.f32.mrb[0].mxu0
      %806 = vmatprep.mubr.bf16.mxu0 %v582
      %807 = vmatmul.mubr.bf16.gmra.mrb[0].mxu0 %v581
      %v808 = vpop.f32.mrb[0].mxu0
      %v809 = vadd.f32 %v620, %v808
      %v810 = vpop.f32.mrb[0].mxu0
      %v811 = vpop.f32.mrb[0].mxu0
      %v812 = vadd.f32 %v620, %v811
      %v813 = vpop.f32.mrb[0].mxu0
      %814 = vdwg.mxu0
      %v815 = vmax.f32 %v753, 0.0
      %v816 = vmax.f32 %v756, 0.0
      %v817 = vmax.f32 %v761, 0.0
      %v818 = vmax.f32 %v764, 0.0
      %v819 = vmax.f32 %v769, 0.0
      %v820 = vmax.f32 %v772, 0.0
      %v821 = vmax.f32 %v777, 0.0
      %v822 = vmax.f32 %v780, 0.0
      %v823 = vmax.f32 %v785, 0.0
      %v824 = vmax.f32 %v788, 0.0
      %v825 = vmax.f32 %v793, 0.0
      %v826 = vmax.f32 %v796, 0.0
      %v827 = vmax.f32 %v801, 0.0
      %v828 = vmax.f32 %v804, 0.0
      %v829 = vmax.f32 %v809, 0.0
      %v830 = vmax.f32 %v812, 0.0
      %v831 = vpack.c.bf16 %v816, %v815
      %v832 = vpack.c.bf16 %v818, %v817
      %v833 = vpack.c.bf16 %v820, %v819
      %v834 = vpack.c.bf16 %v822, %v821
      %v835 = vpack.c.bf16 %v824, %v823
      %v836 = vpack.c.bf16 %v826, %v825
      %v837 = vpack.c.bf16 %v828, %v827
      %v838 = vpack.c.bf16 %v830, %v829
      %v839 = vld [vmem:[%s5] sm:$0xf]
      %v840 = vld [vmem:[%s5 + $0x4] sm:$0xf]
      %v841 = vld [vmem:[%s5 + $0x8] sm:$0xf]
      %v842 = vld [vmem:[%s5 + $0xc] sm:$0xf]
      %v843 = vld [vmem:[%s5 + $0x10] sm:$0xf]
      %v844 = vld [vmem:[%s5 + $0x14] sm:$0xf]
      %v845 = vld [vmem:[%s5 + $0x18] sm:$0xf]
      %v846 = vld [vmem:[%s5 + $0x1c] sm:$0xf]
      %v847 = vld [vmem:[%s5 + $0x20] sm:$0xf]
      %v848 = vld [vmem:[%s5 + $0x24] sm:$0xf]
      %v849 = vld [vmem:[%s5 + $0x28] sm:$0xf]
      %v850 = vld [vmem:[%s5 + $0x2c] sm:$0xf]
      %v851 = vld [vmem:[%s5 + $0x30] sm:$0xf]
      %v852 = vld [vmem:[%s5 + $0x34] sm:$0xf]
      %v853 = vld [vmem:[%s5 + $0x38] sm:$0xf]
      %v854 = vld [vmem:[%s5 + $0x3c] sm:$0xf]
      %v855 = vld [vmem:[%s6] sm:$0x1]
      %v857 = vlaneseq
      %v858 = vshrl.u32 %v857, 7
      %v859 = vsub.s32 0, %v858
      %v860 = vrot.slane %v855, %v859
      %v878 = vunpack.c.l.b16 %v839
      %v879 = vunpack.c.l.b16 %v840
      %v880 = vunpack.c.l.b16 %v841
      %v881 = vunpack.c.l.b16 %v842
      %v882 = vunpack.c.l.b16 %v843
      %v883 = vunpack.c.l.b16 %v844
      %v884 = vunpack.c.l.b16 %v845
      %v885 = vunpack.c.l.b16 %v846
      %v886 = vunpack.c.l.b16 %v847
      %v887 = vunpack.c.l.b16 %v848
      %v888 = vunpack.c.l.b16 %v849
      %v889 = vunpack.c.l.b16 %v850
      %v890 = vunpack.c.l.b16 %v851
      %v891 = vunpack.c.l.b16 %v852
      %v892 = vunpack.c.l.b16 %v853
      %v893 = vunpack.c.l.b16 %v854
      %v894 = vpack.c.b16 %v879, %v878
      %v895 = vpack.c.b16 %v881, %v880
      %v896 = vpack.c.b16 %v883, %v882
      %v897 = vpack.c.b16 %v885, %v884
      %v898 = vpack.c.b16 %v887, %v886
      %v899 = vpack.c.b16 %v889, %v888
      %v900 = vpack.c.b16 %v891, %v890
      %v901 = vpack.c.b16 %v893, %v892
      %910 = vmatprep.subr.bf16.mxu0 0
      %911 = vmatpush1.bf16.msra.mxu0 %v894
      %912 = vmatprep.subr.bf16.mxu0 0
      %913 = vmatpush1.bf16.msra.mxu0 %v895
      %914 = vmatprep.subr.bf16.mxu0 0
      %915 = vmatpush1.bf16.msra.mxu0 %v896
      %916 = vmatprep.subr.bf16.mxu0 0
      %917 = vmatpush1.bf16.msra.mxu0 %v897
      %918 = vmatprep.subr.bf16.mxu0 0
      %919 = vmatpush1.bf16.msra.mxu0 %v898
      %920 = vmatprep.subr.bf16.mxu0 0
      %921 = vmatpush1.bf16.msra.mxu0 %v899
      %922 = vmatprep.subr.bf16.mxu0 0
      %923 = vmatpush1.bf16.msra.mxu0 %v900
      %924 = vmatprep.subr.bf16.mxu0 0
      %925 = vmatpush1.bf16.msra.mxu0 %v901
      %926 = vmatprep.subr.bf16.mxu0 0
      %927 = vmatpush1.bf16.msra.mxu0 0
      %928 = vmatprep.subr.bf16.mxu0 0
      %929 = vmatpush1.bf16.msra.mxu0 0
      %930 = vmatprep.subr.bf16.mxu0 0
      %931 = vmatpush1.bf16.msra.mxu0 0
      %932 = vmatprep.subr.bf16.mxu0 0
      %933 = vmatpush1.bf16.msra.mxu0 0
      %934 = vmatprep.subr.bf16.mxu0 0
      %935 = vmatpush1.bf16.msra.mxu0 0
      %936 = vmatprep.subr.bf16.mxu0 0
      %937 = vmatpush1.bf16.msra.mxu0 0
      %938 = vmatprep.subr.bf16.mxu0 0
      %939 = vmatpush1.bf16.msra.mxu0 0
      %940 = vmatprep.subr.bf16.mxu0 0
      %941 = vmatpush1.bf16.msra.mxu0 0
      %942 = vmatprep.mubr.bf16.mxu0 0
      %943 = vmatmul.mubr.bf16.gmra.mrb[0].mxu0 %v831
      %v944 = vpop.f32.mrb[0].mxu0
      %v945 = vadd.f32 %v860, %v944
      %v946 = vpop.f32.mrb[0].mxu0
      %v947 = vpop.f32.mrb[0].mxu0
      %v948 = vadd.f32 %v860, %v947
      %v949 = vpop.f32.mrb[0].mxu0
      %950 = vmatprep.mubr.bf16.mxu0 0
      %951 = vmatmul.mubr.bf16.gmra.mrb[0].mxu0 %v832
      %v952 = vpop.f32.mrb[0].mxu0
      %v953 = vadd.f32 %v860, %v952
      %v954 = vpop.f32.mrb[0].mxu0
      %v955 = vpop.f32.mrb[0].mxu0
      %v956 = vadd.f32 %v860, %v955
      %v957 = vpop.f32.mrb[0].mxu0
      %958 = vmatprep.mubr.bf16.mxu0 0
      %959 = vmatmul.mubr.bf16.gmra.mrb[0].mxu0 %v833
      %v960 = vpop.f32.mrb[0].mxu0
      %v961 = vadd.f32 %v860, %v960
      %v962 = vpop.f32.mrb[0].mxu0
      %v963 = vpop.f32.mrb[0].mxu0
      %v964 = vadd.f32 %v860, %v963
      %v965 = vpop.f32.mrb[0].mxu0
      %966 = vmatprep.mubr.bf16.mxu0 0
      %967 = vmatmul.mubr.bf16.gmra.mrb[0].mxu0 %v834
      %v968 = vpop.f32.mrb[0].mxu0
      %v969 = vadd.f32 %v860, %v968
      %v970 = vpop.f32.mrb[0].mxu0
      %v971 = vpop.f32.mrb[0].mxu0
      %v972 = vadd.f32 %v860, %v971
      %v973 = vpop.f32.mrb[0].mxu0
      %974 = vmatprep.mubr.bf16.mxu0 0
      %975 = vmatmul.mubr.bf16.gmra.mrb[0].mxu0 %v835
      %v976 = vpop.f32.mrb[0].mxu0
      %v977 = vadd.f32 %v860, %v976
      %v978 = vpop.f32.mrb[0].mxu0
      %v979 = vpop.f32.mrb[0].mxu0
      %v980 = vadd.f32 %v860, %v979
      %v981 = vpop.f32.mrb[0].mxu0
      %982 = vmatprep.mubr.bf16.mxu0 0
      %983 = vmatmul.mubr.bf16.gmra.mrb[0].mxu0 %v836
      %v984 = vpop.f32.mrb[0].mxu0
      %v985 = vadd.f32 %v860, %v984
      %v986 = vpop.f32.mrb[0].mxu0
      %v987 = vpop.f32.mrb[0].mxu0
      %v988 = vadd.f32 %v860, %v987
      %v989 = vpop.f32.mrb[0].mxu0
      %990 = vmatprep.mubr.bf16.mxu0 0
      %991 = vmatmul.mubr.bf16.gmra.mrb[0].mxu0 %v837
      %v992 = vpop.f32.mrb[0].mxu0
      %v993 = vadd.f32 %v860, %v992
      %v994 = vpop.f32.mrb[0].mxu0
      %v995 = vpop.f32.mrb[0].mxu0
      %v996 = vadd.f32 %v860, %v995
      %v997 = vpop.f32.mrb[0].mxu0
      %998 = vmatprep.mubr.bf16.mxu0 0
      %999 = vmatmul.mubr.bf16.gmra.mrb[0].mxu0 %v838
      %v1000 = vpop.f32.mrb[0].mxu0
      %v1001 = vadd.f32 %v860, %v1000
      %v1002 = vpop.f32.mrb[0].mxu0
      %v1003 = vpop.f32.mrb[0].mxu0
      %v1004 = vadd.f32 %v860, %v1003
      %v1005 = vpop.f32.mrb[0].mxu0
      %1006 = vdwg.mxu0
      %v1007 = vmax.f32 %v945, 0.0
      %v1008 = vmax.f32 %v948, 0.0
      %v1009 = vmax.f32 %v953, 0.0
      %v1010 = vmax.f32 %v956, 0.0
      %v1011 = vmax.f32 %v961, 0.0
      %v1012 = vmax.f32 %v964, 0.0
      %v1013 = vmax.f32 %v969, 0.0
      %v1014 = vmax.f32 %v972, 0.0
      %v1015 = vmax.f32 %v977, 0.0
      %v1016 = vmax.f32 %v980, 0.0
      %v1017 = vmax.f32 %v985, 0.0
      %v1018 = vmax.f32 %v988, 0.0
      %v1019 = vmax.f32 %v993, 0.0
      %v1020 = vmax.f32 %v996, 0.0
      %v1021 = vmax.f32 %v1001, 0.0
      %v1022 = vmax.f32 %v1004, 0.0
      %v1023 = vpack.c.bf16 %v1008, %v1007
      %v1024 = vpack.c.bf16 %v1010, %v1009
      %v1025 = vpack.c.bf16 %v1012, %v1011
      %v1026 = vpack.c.bf16 %v1014, %v1013
      %v1027 = vpack.c.bf16 %v1016, %v1015
      %v1028 = vpack.c.bf16 %v1018, %v1017
      %v1029 = vpack.c.bf16 %v1020, %v1019
      %v1030 = vpack.c.bf16 %v1022, %v1021
      %v1031 = vld [vmem:[%s7] sm:$0xf]
      %v1032 = vld [vmem:[%s7 + $0x4] sm:$0xf]
      %v1033 = vld [vmem:[%s7 + $0x8] sm:$0xf]
      %v1034 = vld [vmem:[%s7 + $0xc] sm:$0xf]
      %v1035 = vld [vmem:[%s7 + $0x10] sm:$0xf]
      %v1036 = vld [vmem:[%s7 + $0x14] sm:$0xf]
      %v1037 = vld [vmem:[%s7 + $0x18] sm:$0xf]
      %v1038 = vld [vmem:[%s7 + $0x1c] sm:$0xf]
      %v1039 = vld [vmem:[%s8] sm:$0x1]
      %v1041 = vlaneseq
      %v1042 = vshrl.u32 %v1041, 7
      %v1043 = vsub.s32 0, %v1042
      %v1044 = vrot.slane %v1039, %v1043
      %v1054 = vunpack.c.l.b16 %v1031
      %v1055 = vunpack.c.l.b16 %v1032
      %v1056 = vunpack.c.l.b16 %v1033
      %v1057 = vunpack.c.l.b16 %v1034
      %v1058 = vunpack.c.l.b16 %v1035
      %v1059 = vunpack.c.l.b16 %v1036
      %v1060 = vunpack.c.l.b16 %v1037
      %v1061 = vunpack.c.l.b16 %v1038
      %v1062 = vpack.c.b16 %v1055, %v1054
      %v1063 = vpack.c.b16 %v1057, %v1056
      %v1064 = vpack.c.b16 %v1059, %v1058
      %v1065 = vpack.c.b16 %v1061, %v1060
      %vm1070 = vcmask 523264
      %v1072 = vsel %vm1070, %v1023, 0
      %v1075 = vsel %vm1070, %v1024, 0
      %v1078 = vsel %vm1070, %v1025, 0
      %v1081 = vsel %vm1070, %v1026, 0
      %v1084 = vsel %vm1070, %v1027, 0
      %v1087 = vsel %vm1070, %v1028, 0
      %v1090 = vsel %vm1070, %v1029, 0
      %v1093 = vsel %vm1070, %v1030, 0
      %1095 = vmatprep.subr.bf16.mxu0 0
      %1096 = vmatpush1.bf16.msra.mxu0 %v1062
      %1097 = vmatprep.subr.bf16.mxu0 0
      %1098 = vmatpush1.bf16.msra.mxu0 %v1063
      %1099 = vmatprep.subr.bf16.mxu0 0
      %1100 = vmatpush1.bf16.msra.mxu0 %v1064
      %1101 = vmatprep.subr.bf16.mxu0 0
      %1102 = vmatpush1.bf16.msra.mxu0 %v1065
      %1103 = vmatprep.subr.bf16.mxu0 0
      %1104 = vmatpush1.bf16.msra.mxu0 0
      %1105 = vmatprep.subr.bf16.mxu0 0
      %1106 = vmatpush1.bf16.msra.mxu0 0
      %1107 = vmatprep.subr.bf16.mxu0 0
      %1108 = vmatpush1.bf16.msra.mxu0 0
      %1109 = vmatprep.subr.bf16.mxu0 0
      %1110 = vmatpush1.bf16.msra.mxu0 0
      %1111 = vmatprep.subr.bf16.mxu0 0
      %1112 = vmatpush1.bf16.msra.mxu0 0
      %1113 = vmatprep.subr.bf16.mxu0 0
      %1114 = vmatpush1.bf16.msra.mxu0 0
      %1115 = vmatprep.subr.bf16.mxu0 0
      %1116 = vmatpush1.bf16.msra.mxu0 0
      %1117 = vmatprep.subr.bf16.mxu0 0
      %1118 = vmatpush1.bf16.msra.mxu0 0
      %1119 = vmatprep.subr.bf16.mxu0 0
      %1120 = vmatpush1.bf16.msra.mxu0 0
      %1121 = vmatprep.subr.bf16.mxu0 0
      %1122 = vmatpush1.bf16.msra.mxu0 0
      %1123 = vmatprep.subr.bf16.mxu0 0
      %1124 = vmatpush1.bf16.msra.mxu0 0
      %1125 = vmatprep.subr.bf16.mxu0 0
      %1126 = vmatpush1.bf16.msra.mxu0 0
      %1127 = vmatprep.mubr.bf16.mxu0 0
      %1128 = vmatmul.mubr.bf16.gmra.mrb[0].mxu0 %v1072
      %v1129 = vpop.f32.mrb[0].mxu0
      %v1130 = vadd.f32 %v1044, %v1129
      %v1131 = vpop.f32.mrb[0].mxu0
      %v1132 = vpop.f32.mrb[0].mxu0
      %v1133 = vadd.f32 %v1044, %v1132
      %v1134 = vpop.f32.mrb[0].mxu0
      %1135 = vmatprep.mubr.bf16.mxu0 0
      %1136 = vmatmul.mubr.bf16.gmra.mrb[0].mxu0 %v1075
      %v1137 = vpop.f32.mrb[0].mxu0
      %v1138 = vadd.f32 %v1044, %v1137
      %v1139 = vpop.f32.mrb[0].mxu0
      %v1140 = vpop.f32.mrb[0].mxu0
      %v1141 = vadd.f32 %v1044, %v1140
      %v1142 = vpop.f32.mrb[0].mxu0
      %1143 = vmatprep.mubr.bf16.mxu0 0
      %1144 = vmatmul.mubr.bf16.gmra.mrb[0].mxu0 %v1078
      %v1145 = vpop.f32.mrb[0].mxu0
      %v1146 = vadd.f32 %v1044, %v1145
      %v1147 = vpop.f32.mrb[0].mxu0
      %v1148 = vpop.f32.mrb[0].mxu0
      %v1149 = vadd.f32 %v1044, %v1148
      %v1150 = vpop.f32.mrb[0].mxu0
      %1151 = vmatprep.mubr.bf16.mxu0 0
      %1152 = vmatmul.mubr.bf16.gmra.mrb[0].mxu0 %v1081
      %v1153 = vpop.f32.mrb[0].mxu0
      %v1154 = vadd.f32 %v1044, %v1153
      %v1155 = vpop.f32.mrb[0].mxu0
      %v1156 = vpop.f32.mrb[0].mxu0
      %v1157 = vadd.f32 %v1044, %v1156
      %v1158 = vpop.f32.mrb[0].mxu0
      %1159 = vmatprep.mubr.bf16.mxu0 0
      %1160 = vmatmul.mubr.bf16.gmra.mrb[0].mxu0 %v1084
      %v1161 = vpop.f32.mrb[0].mxu0
      %v1162 = vadd.f32 %v1044, %v1161
      %v1163 = vpop.f32.mrb[0].mxu0
      %v1164 = vpop.f32.mrb[0].mxu0
      %v1165 = vadd.f32 %v1044, %v1164
      %v1166 = vpop.f32.mrb[0].mxu0
      %1167 = vmatprep.mubr.bf16.mxu0 0
      %1168 = vmatmul.mubr.bf16.gmra.mrb[0].mxu0 %v1087
      %v1169 = vpop.f32.mrb[0].mxu0
      %v1170 = vadd.f32 %v1044, %v1169
      %v1171 = vpop.f32.mrb[0].mxu0
      %v1172 = vpop.f32.mrb[0].mxu0
      %v1173 = vadd.f32 %v1044, %v1172
      %v1174 = vpop.f32.mrb[0].mxu0
      %1175 = vmatprep.mubr.bf16.mxu0 0
      %1176 = vmatmul.mubr.bf16.gmra.mrb[0].mxu0 %v1090
      %v1177 = vpop.f32.mrb[0].mxu0
      %v1178 = vadd.f32 %v1044, %v1177
      %v1179 = vpop.f32.mrb[0].mxu0
      %v1180 = vpop.f32.mrb[0].mxu0
      %v1181 = vadd.f32 %v1044, %v1180
      %v1182 = vpop.f32.mrb[0].mxu0
      %1183 = vmatprep.mubr.bf16.mxu0 0
      %1184 = vmatmul.mubr.bf16.gmra.mrb[0].mxu0 %v1093
      %v1185 = vpop.f32.mrb[0].mxu0
      %v1186 = vadd.f32 %v1044, %v1185
      %v1187 = vpop.f32.mrb[0].mxu0
      %v1188 = vpop.f32.mrb[0].mxu0
      %v1189 = vadd.f32 %v1044, %v1188
      %v1190 = vpop.f32.mrb[0].mxu0
      %1191 = vdwg.mxu0
      %v1192 = vpack.c.bf16 %v1133, %v1130
      %v1193 = vpack.c.bf16 %v1141, %v1138
      %v1194 = vpack.c.bf16 %v1149, %v1146
      %v1195 = vpack.c.bf16 %v1157, %v1154
      %v1196 = vpack.c.bf16 %v1165, %v1162
      %v1197 = vpack.c.bf16 %v1173, %v1170
      %v1198 = vpack.c.bf16 %v1181, %v1178
      %v1199 = vpack.c.bf16 %v1189, %v1186
      %v1208 = vunpack.c.l.b16 %v1192
      %v1209 = vunpack.c.h.b16 %v1192
      %v1210 = vunpack.c.l.b16 %v1193
      %v1211 = vunpack.c.h.b16 %v1193
      %v1212 = vunpack.c.l.b16 %v1194
      %v1213 = vunpack.c.h.b16 %v1194
      %v1214 = vunpack.c.l.b16 %v1195
      %v1215 = vunpack.c.h.b16 %v1195
      %v1216 = vunpack.c.l.b16 %v1196
      %v1217 = vunpack.c.h.b16 %v1196
      %v1218 = vunpack.c.l.b16 %v1197
      %v1219 = vunpack.c.h.b16 %v1197
      %v1220 = vunpack.c.l.b16 %v1198
      %v1221 = vunpack.c.h.b16 %v1198
      %v1222 = vunpack.c.l.b16 %v1199
      %v1223 = vunpack.c.h.b16 %v1199
      %v1224 = vpack.c.b16 %v1208, %v1208
      %v1225 = vpack.c.b16 %v1209, %v1209
      %v1226 = vpack.c.b16 %v1210, %v1210
      %v1227 = vpack.c.b16 %v1211, %v1211
      %v1228 = vpack.c.b16 %v1212, %v1212
      %v1229 = vpack.c.b16 %v1213, %v1213
      %v1230 = vpack.c.b16 %v1214, %v1214
      %v1231 = vpack.c.b16 %v1215, %v1215
      %v1232 = vpack.c.b16 %v1216, %v1216
      %v1233 = vpack.c.b16 %v1217, %v1217
      %v1234 = vpack.c.b16 %v1218, %v1218
      %v1235 = vpack.c.b16 %v1219, %v1219
      %v1236 = vpack.c.b16 %v1220, %v1220
      %v1237 = vpack.c.b16 %v1221, %v1221
      %v1238 = vpack.c.b16 %v1222, %v1222
      %v1239 = vpack.c.b16 %v1223, %v1223
      %vm1256 = vcmask 60416
      %1257 = vst.msk [vmem:[%s334] sm:$0xf] %vm1256, %v1224
      %1258 = vst.msk [vmem:[%s334 + $0x4] sm:$0xf] %vm1256, %v1225
      %1259 = vst.msk [vmem:[%s334 + $0x8] sm:$0xf] %vm1256, %v1226
      %1260 = vst.msk [vmem:[%s334 + $0xc] sm:$0xf] %vm1256, %v1227
      %1261 = vst.msk [vmem:[%s334 + $0x10] sm:$0xf] %vm1256, %v1228
      %1262 = vst.msk [vmem:[%s334 + $0x14] sm:$0xf] %vm1256, %v1229
      %1263 = vst.msk [vmem:[%s334 + $0x18] sm:$0xf] %vm1256, %v1230
      %1264 = vst.msk [vmem:[%s334 + $0x1c] sm:$0xf] %vm1256, %v1231
      %1265 = vst.msk [vmem:[%s334 + $0x20] sm:$0xf] %vm1256, %v1232
      %1266 = vst.msk [vmem:[%s334 + $0x24] sm:$0xf] %vm1256, %v1233
      %1267 = vst.msk [vmem:[%s334 + $0x28] sm:$0xf] %vm1256, %v1234
      %1268 = vst.msk [vmem:[%s334 + $0x2c] sm:$0xf] %vm1256, %v1235
      %1269 = vst.msk [vmem:[%s334 + $0x30] sm:$0xf] %vm1256, %v1236
      %1270 = vst.msk [vmem:[%s334 + $0x34] sm:$0xf] %vm1256, %v1237
      %1271 = vst.msk [vmem:[%s334 + $0x38] sm:$0xf] %vm1256, %v1238
      %1272 = vst.msk [vmem:[%s334 + $0x3c] sm:$0xf] %vm1256, %v1239
      %s1273 = smul.u32 16, %s20
      %p1274 = scmp.lt.s32.totalorder %s1273, 31
      %s1275 = scalar_select %p1274, %s1273, 31
      %s1276 = smul.addr %s1275, 4
      %s1277 = scalar_lea.vmem %s9, %s1276
      // Predicated region
      $region57: #{tpu_custom_call.1} parent=55 // pred_check
        %p1278 = pneg %p232
      $region58: #{tpu_custom_call.1} parent=55 // pred_check_branch
        %1280 = sbr.rel (%p1278) target = $region60
      $region59: #{tpu_custom_call.1} parent=55 // pred_region
        %s1281 = smul.u32 16, %s20
      $region60: #{tpu_custom_call.1} parent=55 // pred_fallthru
        _
    $region56: #{tpu_custom_call.1} parent=5 // pred_fallthru
      _
    %p1282 = scmp.le.s32.totalorder 2, %s15
    // Predicated region
    $region61: #{tpu_custom_call.1} parent=5 // pred_check
      %p1283 = pneg %p1282
    $region62: #{tpu_custom_call.1} parent=5 // pred_check_branch
      %1285 = sbr.rel (%p1283) target = $region64
    $region63: #{tpu_custom_call.1} parent=5 // pred_region
      %s1286 = ssub.s32 %s15, 2
      // Predicated region
      $region65: #{tpu_custom_call.1} parent=63 // pred_check
        %p1287 = pneg %p238
      $region66: #{tpu_custom_call.1} parent=63 // pred_check_branch
        %1289 = sbr.rel (%p1287) target = $region68
      $region67: #{tpu_custom_call.1} parent=63 // pred_region
        %s1290 = smul.u32 16, %s21
        %p1291 = scmp.lt.s32.totalorder %s1290, 31
        %s1292 = scalar_select %p1291, %s1290, 31
        %s1293 = smul.addr %s1292, 4
        %s1294 = scalar_lea.vmem %s9, %s1293
      $region68: #{tpu_custom_call.1} parent=63 // pred_fallthru
        _
    $region64: #{tpu_custom_call.1} parent=5 // pred_fallthru
      _
  $region6: #{tpu_custom_call.1} parent=0 // loop_footer
    %s19 = sadd.s32 1, %s15
  $region7: #{tpu_custom_call.1} parent=0 // loop_footer_branch
    %14 = sbr.rel target = $region3
  $region8: #{tpu_custom_call.1} parent=0 // loop_exit
    _

</llo_original>
